<compile_context>
chip_gen: v7x
topology: tpu7x:2x2x1
jax: 0.10.0
libtpu: 0.0.40
codegen_flags: <defaults>
</compile_context>

<pallas_src>
import functools

import numpy as np
import jax
import jax.numpy as jnp
from jax.experimental import pallas as pl
from jax.experimental.pallas import tpu as pltpu

FP8_DTYPE = jnp.float8_e4m3fn
FP8_MAX = 448.0
FP8_MIN = -448.0


# ----------------------------- quantization (offline glue, plain JAX) --------
def quantize_fp8_per_channel(w, channel_axis=0, clamp_bound=float("inf")):
    """JAX equivalent of quantize_fp8_per_channel in the PyTorch module."""
    w32 = w.astype(jnp.float32)
    dims = tuple(d for d in range(w.ndim) if d != channel_axis)
    max_vals = jnp.max(jnp.abs(w32), axis=dims, keepdims=True)
    if clamp_bound != float("inf"):
        max_vals = jnp.clip(max_vals, -clamp_bound, clamp_bound)
    scales = jnp.maximum(max_vals / FP8_MAX, 1e-5)
    q = jnp.clip(w32 / scales, FP8_MIN, FP8_MAX).astype(FP8_DTYPE)
    scale_shape = [1] * w.ndim
    scale_shape[channel_axis] = w.shape[channel_axis]
    return q, scales.reshape(scale_shape).astype(jnp.float32)


def pack_weights(w_q, scale):
    """One-time packing: weight as [K, N] fp8 (lane-dense over output channels)
    and scale as [1, N] f32."""
    return jnp.transpose(w_q), jnp.transpose(scale)


# ----------------------------- Pallas kernels ---------------------------------
def _qlinear_kernel_scratch(x_ref, w_ref, s_ref, o_ref, acc_ref, *, fp8_direct):
    """Generic-output-dtype variant: f32 VMEM accumulator, final astype."""
    k = pl.program_id(2)

    @pl.when(k == 0)
    def _():
        acc_ref[...] = jnp.zeros_like(acc_ref)

    w = w_ref[...]
    if not fp8_direct:
        # fp8_e4m3fn -> bf16 is exact; MXU runs bf16 x bf16 with f32 acc.
        w = w.astype(jnp.bfloat16)
    acc_ref[...] += jnp.dot(x_ref[...], w, preferred_element_type=jnp.float32)

    @pl.when(k == pl.num_programs(2) - 1)
    def _():
        # Per-output-channel scale on the small [tm, tn] accumulator.
        o_ref[...] = (acc_ref[...] * s_ref[...]).astype(o_ref.dtype)


def _qlinear_kernel_f32out(x_ref, w_ref, s_ref, o_ref, *, fp8_direct):
    """f32-output variant: accumulate directly into the resident output block
    (its block index ignores k) -> no separate scratch buffer."""
    k = pl.program_id(2)

    @pl.when(k == 0)
    def _():
        o_ref[...] = jnp.zeros_like(o_ref)

    w = w_ref[...]
    if not fp8_direct:
        w = w.astype(jnp.bfloat16)
    o_ref[...] += jnp.dot(x_ref[...], w, preferred_element_type=jnp.float32)

    @pl.when(k == pl.num_programs(2) - 1)
    def _():
        o_ref[...] = o_ref[...] * s_ref[...]


# ----------------------------- tiling / chip selection ------------------------
def _tpu_generation():
    try:
        kind = jax.devices()[0].device_kind.lower()
    except Exception:
        return "unknown"
    if "v5e" in kind or "v5 lite" in kind or "v5lite" in kind:
        return "v5e"
    if "v6" in kind:
        return "v6e"
    if "7" in kind:
        return "v7x"
    return "unknown"


# (tm, tn, tk, lane_align): picked so 2*tm*tn/(2*tm+tn) clears each chip's
# HBM->MXU ridge while the double-buffered tile budget stays well inside the
# scoped VMEM limit (v7x only has 64 MiB physical VMEM).
_TILE_TABLE = {
    "v5e":     (256, 512, 512, 128),   # ridge ~240 flop/B, 4x128^2 MXU
    "v6e":     (512, 1024, 512, 256),  # ridge ~650 flop/B, 2x256^2 MXU
    "v7x":     (512, 512, 512, 256),   # ridge ~310 flop/B, keep VMEM modest
    "unknown": (256, 512, 512, 128),
}


def _round_up(x, m):
    return (x + m - 1) // m * m


def _pick_tile(dim, pref, align):
    """Largest tile <= pref that divides dim and is a multiple of `align`,
    falling back to the full dimension (always a legal block extent).
    NOTE: for dims that are not multiples of 128 this falls back to the full
    dim (no masking); fine for small layers, caller beware for huge ragged N."""
    t = min(pref, dim)
    t = (t // align) * align
    while t >= align:
        if dim % t == 0:
            return t
        t -= align
    return dim


# ----------------------------- forward wrapper ---------------------------------
def quantized_linear(x, w_kn, s_1n, *, tiles=None, out_dtype=None):
    """y = x @ dequantize(W).T with the dequant fused into a tiled matmul.

    x:    [..., K]  activations (downcast to bf16 for the MXU, f32 accumulation)
    w_kn: [K, N]    fp8_e4m3fn quantized weight, pre-transposed at packing time
    w_1n: [1, N]    per-output-channel f32 scales
    out_dtype: defaults to x.dtype (use bf16 for inference to halve writeback).
    """
    K, N = w_kn.shape
    assert x.shape[-1] == K
    orig_lead = x.shape[:-1]
    out_dtype = np.dtype(x.dtype if out_dtype is None else out_dtype)

    gen = _tpu_generation()
    tm_pref, tn_pref, tk_pref, lane_align = (
        tiles if tiles is not None else _TILE_TABLE[gen]
    )
    fp8_direct = gen == "v7x"   # bf16 x fp8 is native on the v7x MXU

    # Activations fed to the MXU as bf16 (matches the reference tolerance).
    x2d = x.reshape(-1, K).astype(jnp.bfloat16)                    # [M, K]
    M = x2d.shape[0]

    # bf16 packs 16 rows per vreg -> pad M to a multiple of 16.
    tm_eff = min(tm_pref, _round_up(M, 16))
    M_pad = _round_up(M, tm_eff)
    if M_pad != M:
        x2d = jnp.pad(x2d, ((0, M_pad - M), (0, 0)))

    tn_eff = _pick_tile(N, tn_pref, lane_align)
    tk_eff = _pick_tile(K, tk_pref, 128)

    # Grid (j, i, k): N leads so megacore sharding splits disjoint weight
    # columns (each TC reads the fp8 weight exactly once); K (reduction) last.
    grid = (N // tn_eff, M_pad // tm_eff, K // tk_eff)

    in_specs = [
        pl.BlockSpec((tm_eff, tk_eff), lambda j, i, k: (i, k)),    # x (bf16)
        pl.BlockSpec((tk_eff, tn_eff), lambda j, i, k: (k, j)),    # W (fp8)
        pl.BlockSpec((1, tn_eff), lambda j, i, k: (0, j)),         # scales (f32)
    ]
    # TODO(synk): for decode (single M tile, pure weight-BW bound) consider
    # pipeline_mode=pl.Buffered(3) on the weight BlockSpec to hide DMA latency.
    out_spec = pl.BlockSpec((tm_eff, tn_eff), lambda j, i, k: (i, j))

    if out_dtype == np.float32:
        kernel = functools.partial(_qlinear_kernel_f32out, fp8_direct=fp8_direct)
        scratch_shapes = []
    else:
        kernel = functools.partial(_qlinear_kernel_scratch, fp8_direct=fp8_direct)
        scratch_shapes = [pltpu.VMEM((tm_eff, tn_eff), jnp.float32)]

    out = pl.pallas_call(
        kernel,
        out_shape=jax.ShapeDtypeStruct((M_pad, N), out_dtype),
        grid_spec=pltpu.PrefetchScalarGridSpec(
            num_scalar_prefetch=0,
            grid=grid,
            in_specs=in_specs,
            out_specs=out_spec,
            scratch_shapes=scratch_shapes,
        ),
        compiler_params=pltpu.CompilerParams(
            dimension_semantics=("parallel", "parallel", "arbitrary"),
        ),
    )(x2d, w_kn, s_1n)

    if M_pad != M:
        out = out[:M]
    return out.reshape(*orig_lead, N)


# ----------------------------- driver ------------------------------------------
if __name__ == "__main__":
    B, S, IN_FEATURES, OUT_FEATURES = 2, 8, 32, 64

    key = jax.random.PRNGKey(0)
    k_x, k_w = jax.random.split(key)
    x = jax.random.normal(k_x, (B, S, IN_FEATURES), dtype=jnp.float32)
    w_float = jax.random.normal(k_w, (OUT_FEATURES, IN_FEATURES), dtype=jnp.float32)

    # QuantizedLinear.from_float(): per-channel symmetric fp8 quantization, ch_axis=0.
    w_q, scale = quantize_fp8_per_channel(w_float, channel_axis=0)
    # One-time packing to the kernel layout (offline, not per forward).
    w_kn, s_1n = pack_weights(w_q, scale)

    # f32-output path (accumulates in place in the output block, no scratch).
    y = quantized_linear(x, w_kn, s_1n)
    y = jax.block_until_ready(y)

    # bf16-output path (f32 accumulator scratch + final downcast).
    y_bf16 = quantized_linear(x, w_kn, s_1n, out_dtype=jnp.bfloat16)
    y_bf16 = jax.block_until_ready(y_bf16)

    # Reference at the kernel's compute precision: bf16 activations,
    # dequantized weights, f32 accumulation.
    # NOTE: activations are intentionally downcast to bf16 for the MXU; this
    # differs from a pure-fp32 PyTorch forward and is documented for callers.
    w_deq_ref = w_q.astype(jnp.float32) * scale                    # [out, in]
    x_ref = x.astype(jnp.bfloat16).astype(jnp.float32)
    y_ref = jnp.einsum("bsk,nk->bsn", x_ref, w_deq_ref)

    assert y.shape == (B, S, OUT_FEATURES)
    assert jnp.allclose(y, y_ref, rtol=2e-2, atol=2e-2)
    assert jnp.allclose(y_bf16.astype(jnp.float32), y_ref, rtol=3e-2, atol=3e-2)

    print("KERNEL_OK")
</pallas_src>

<mosaic_0001>
module attributes {stable_mosaic.version = 11 : i64} {
  func.func @_qlinear_kernel_f32out(%arg0: i32, %arg1: i32, %arg2: i32, %arg3: memref<16x32xbf16, #tpu.memory_space<vmem>>, %arg4: memref<32x64xf8E4M3FN, #tpu.memory_space<vmem>>, %arg5: memref<1x64xf32, #tpu.memory_space<vmem>>, %arg6: memref<16x64xf32, #tpu.memory_space<vmem>>) attributes {dimension_semantics = [#tpu.dimension_semantics<parallel>, #tpu.dimension_semantics<parallel>, #tpu.dimension_semantics<arbitrary>], iteration_bounds = array<i64: 1, 1, 1>, scalar_prefetch = 0 : i64, scratch_operands = 0 : i64, tpu.core_type = #tpu.core_type<tc>, window_params = [{transform_indices = @transform_0, window_bounds = array<i64: 16, 32>}, {transform_indices = @transform_1, window_bounds = array<i64: 32, 64>}, {transform_indices = @transform_2, window_bounds = array<i64: 1, 64>}, {transform_indices = @transform_3, window_bounds = array<i64: 16, 64>}]} {
    %c0_i32 = arith.constant 0 : i32
    %0 = arith.cmpi eq, %arg2, %c0_i32 : i32
    %1 = arith.extui %0 : i1 to i32
    %c0_i32_0 = arith.constant 0 : i32
    %2 = arith.cmpi ne, %1, %c0_i32_0 : i32
    scf.if %2 {
      %cst_10 = arith.constant 0.000000e+00 : f32
      %13 = vector.broadcast %cst_10 : f32 to vector<16x64xf32>
      %c0_11 = arith.constant 0 : index
      %c0_12 = arith.constant 0 : index
      %14 = vector.load %arg6[%c0_11, %c0_12] : memref<16x64xf32, #tpu.memory_space<vmem>>, vector<16x64xf32>
      tpu.vector_store %arg6[%c0_11, %c0_12], %13 {strides = array<i32>} : memref<16x64xf32, #tpu.memory_space<vmem>>, vector<16x64xf32>,
    } else {
    }
    %c0 = arith.constant 0 : index
    %c0_1 = arith.constant 0 : index
    %3 = vector.load %arg4[%c0, %c0_1] : memref<32x64xf8E4M3FN, #tpu.memory_space<vmem>>, vector<32x64xf8E4M3FN>
    %4 = arith.extf %3 : vector<32x64xf8E4M3FN> to vector<32x64xbf16>
    %c0_2 = arith.constant 0 : index
    %c0_3 = arith.constant 0 : index
    %5 = vector.load %arg6[%c0_2, %c0_3] : memref<16x64xf32, #tpu.memory_space<vmem>>, vector<16x64xf32>
    %c0_4 = arith.constant 0 : index
    %c0_5 = arith.constant 0 : index
    %6 = vector.load %arg3[%c0_4, %c0_5] : memref<16x32xbf16, #tpu.memory_space<vmem>>, vector<16x32xbf16>
    %cst = arith.constant dense<0.000000e+00> : vector<16x64xf32>
    %7 = tpu.matmul %6, %4, %cst {dimension_numbers = #tpu.dot_dimension_numbers<[1], [0], [0], [1], [0, 0, 1, 1], [], []>} : vector<16x32xbf16>, vector<32x64xbf16>, vector<16x64xf32> -> vector<16x64xf32>
    %8 = arith.addf %5, %7 : vector<16x64xf32>
    %c0_6 = arith.constant 0 : index
    %c0_7 = arith.constant 0 : index
    %9 = vector.load %arg6[%c0_6, %c0_7] : memref<16x64xf32, #tpu.memory_space<vmem>>, vector<16x64xf32>
    tpu.vector_store %arg6[%c0_6, %c0_7], %8 {strides = array<i32>} : memref<16x64xf32, #tpu.memory_space<vmem>>, vector<16x64xf32>,
    %c0_i32_8 = arith.constant 0 : i32
    %10 = arith.cmpi eq, %arg2, %c0_i32_8 : i32
    %11 = arith.extui %10 : i1 to i32
    %c0_i32_9 = arith.constant 0 : i32
    %12 = arith.cmpi ne, %11, %c0_i32_9 : i32
    scf.if %12 {
      %c0_10 = arith.constant 0 : index
      %c0_11 = arith.constant 0 : index
      %13 = vector.load %arg6[%c0_10, %c0_11] : memref<16x64xf32, #tpu.memory_space<vmem>>, vector<16x64xf32>
      %c0_12 = arith.constant 0 : index
      %c0_13 = arith.constant 0 : index
      %14 = vector.load %arg5[%c0_12, %c0_13] : memref<1x64xf32, #tpu.memory_space<vmem>>, vector<1x64xf32>
      %15 = vector.broadcast %14 : vector<1x64xf32> to vector<16x64xf32>
      %16 = arith.mulf %13, %15 : vector<16x64xf32>
      %c0_14 = arith.constant 0 : index
      %c0_15 = arith.constant 0 : index
      %17 = vector.load %arg6[%c0_14, %c0_15] : memref<16x64xf32, #tpu.memory_space<vmem>>, vector<16x64xf32>
      tpu.vector_store %arg6[%c0_14, %c0_15], %16 {strides = array<i32>} : memref<16x64xf32, #tpu.memory_space<vmem>>, vector<16x64xf32>,
    } else {
    }
    return
  }
  func.func @transform_0(%arg0: i32, %arg1: i32, %arg2: i32) -> (i32, i32) {
    %c0_i32 = arith.constant 0 : i32
    return %arg1, %arg2 : i32, i32
  }
  func.func @transform_1(%arg0: i32, %arg1: i32, %arg2: i32) -> (i32, i32) {
    %c0_i32 = arith.constant 0 : i32
    return %arg2, %arg0 : i32, i32
  }
  func.func @transform_2(%arg0: i32, %arg1: i32, %arg2: i32) -> (i32, i32) {
    %c0_i32 = arith.constant 0 : i32
    %c0_i32_0 = arith.constant 0 : i32
    return %c0_i32, %arg0 : i32, i32
  }
  func.func @transform_3(%arg0: i32, %arg1: i32, %arg2: i32) -> (i32, i32) {
    %c0_i32 = arith.constant 0 : i32
    return %arg1, %arg0 : i32, i32
  }
}

</mosaic_0001>

<llo_original>
// kernel: tpu_custom_call.1
$region0: #{tpu_custom_call.1}
  #allocation0 [shape = 'u32[]', space=smem, size = 0x4, offset = 0x4, fixed_abs, tag = 'smem constant byte address 0x4 - core index']
  #allocation1 [shape = 'u32[144,128]{1,0:T(1,128)}', space=vmem, size = 0x12000, scoped, tag = 'internal scratch']
  %s0 = inlined_call_operand.hbm [shape: bf16[16,32], index: 0, kind: input, shape index: {}]
  %s1 = inlined_call_operand.hbm [shape: f8e4m3fn[32,64], index: 1, kind: input, shape index: {}]
  %s2 = inlined_call_operand.vmem [shape: f32[1,64], index: 2, kind: input, shape index: {}]
  %s3 = inlined_call_operand.hbm [shape: f32[16,64], index: 3, kind: output, shape index: {}]
  %s4 = sld [smem:[#allocation0]]
  $region38: #{tpu_custom_call.1} parent=0
    _
  %s6 = ssub.s32 1, %s4
  %s7 = scalar_select 0, %s6, %s4
  $region1: #{tpu_custom_call.1} parent=0
    #allocation2 [shape = 'u8[4096]{0}', space=vmem, size = 0x1000, scoped, tag = 'input window, operand 0, single buffered']
    #allocation3 [shape = 's32[1]{0}', space=sflag, size = 0x4, scoped, tag = 'scoped memory for tpu_custom_call.1']
    #allocation4 [shape = 's32[1]{0}', space=sflag, size = 0x4, scoped, tag = 'scoped memory for tpu_custom_call.1']
    #allocation5 [shape = 'u8[4096]{0}', space=vmem, size = 0x1000, scoped, tag = 'input window, operand 1, single buffered']
    #allocation6 [shape = 's32[1]{0}', space=sflag, size = 0x4, scoped, tag = 'scoped memory for tpu_custom_call.1']
    #allocation7 [shape = 'u8[8192]{0}', space=vmem, size = 0x2000, scoped, tag = 'output window, operand 0, single buffered']
    %8 = vsyncpa [#allocation3], 0
    %9 = vsyncpa [#allocation6], 0
    %10 = vsyncpa [#allocation4], 0
    // Predicated region
    $region2: #{tpu_custom_call.1} parent=1 // pred_check
      _
    $region3: #{tpu_custom_call.1} parent=1 // pred_check_branch
      %12 = sbr.rel (0) target = $region5
    $region4: #{tpu_custom_call.1} parent=1 // pred_region
      %s14 = ssub.s32 128, 128
      %15 = vsyncadd [#allocation3], %s14
      %s16 = sshll.u32 [#allocation2], 4
      %s17 = int_to_ptr.vmem [resolvable:$true] %s16
      %22 = dma.hbm_to_vmem [thread:$0]  %s0, 128, %s17, [#allocation3], 64, 64, 4
    $region5: #{tpu_custom_call.1} parent=1 // pred_fallthru
      _
    // Predicated region
    $region6: #{tpu_custom_call.1} parent=1 // pred_check
      _
    $region7: #{tpu_custom_call.1} parent=1 // pred_check_branch
      %24 = sbr.rel (0) target = $region9
    $region8: #{tpu_custom_call.1} parent=1 // pred_region
      %s26 = ssub.s32 128, 128
      %27 = vsyncadd [#allocation6], %s26
      %s29 = sshll.u32 [#allocation5], 4
      %s30 = int_to_ptr.vmem [resolvable:$true] %s29
      %32 = dma.hbm_to_vmem [thread:$0]  %s1, 128, %s30, [#allocation6]
    $region9: #{tpu_custom_call.1} parent=1 // pred_fallthru
      _
    // Predicated region
    $region10: #{tpu_custom_call.1} parent=1 // pred_check
      _
    $region11: #{tpu_custom_call.1} parent=1 // pred_check_branch
      %34 = sbr.rel (0) target = $region13
    $region12: #{tpu_custom_call.1} parent=1 // pred_region
      _
    $region13: #{tpu_custom_call.1} parent=1 // pred_fallthru
      _
    // Predicated region
    $region14: #{tpu_custom_call.1} parent=1 // pred_check
      _
    $region15: #{tpu_custom_call.1} parent=1 // pred_check_branch
      %36 = sbr.rel (0) target = $region17
    $region16: #{tpu_custom_call.1} parent=1 // pred_region
      %37 = dma.done [#allocation3], 128
    $region17: #{tpu_custom_call.1} parent=1 // pred_fallthru
      _
    // Predicated region
    $region18: #{tpu_custom_call.1} parent=1 // pred_check
      _
    $region19: #{tpu_custom_call.1} parent=1 // pred_check_branch
      %39 = sbr.rel (0) target = $region21
    $region20: #{tpu_custom_call.1} parent=1 // pred_region
      %40 = dma.done [#allocation6], 128
    $region21: #{tpu_custom_call.1} parent=1 // pred_fallthru
      _
    %p42 = scmp.eq.s32.totalorder 0, 0
    // Predicated region
    $region22: #{tpu_custom_call.1} parent=1 // pred_check
      %p43 = pneg %p42
    $region23: #{tpu_custom_call.1} parent=1 // pred_check_branch
      %45 = sbr.rel (%p43) target = $region25
    $region24: #{tpu_custom_call.1} parent=1 // pred_region
      %vm46 = vcmask 523264
      %47 = vst.msk [vmem:[#allocation7] sm:$0xff] %vm46, 0.0
      %48 = vst.msk [vmem:[#allocation7 + $0x8] sm:$0xff] %vm46, 0.0
    $region25: #{tpu_custom_call.1} parent=1 // pred_fallthru
      _
    %v49 = vld [vmem:[#allocation5] sm:$0xff]
    %v50 = vunpack.c.l.f8e4m3fn %v49
    %v51 = vunpack.c.h.f8e4m3fn %v49
    %v52 = vld [vmem:[#allocation7] sm:$0xff]
    %v53 = vld [vmem:[#allocation7 + $0x8] sm:$0xff]
    %v54 = vld [vmem:[#allocation2] sm:$0xf]
    %v55 = vld [vmem:[#allocation2 + $0x4] sm:$0xf]
    %v58 = vunpack.c.l.b16 %v54
    %v59 = vunpack.c.l.b16 %v55
    %v60 = vpack.c.b16 %v59, %v58
    %vm61 = vcmask 261120
    %v63 = vsel %vm61, %v60, 0
    %65 = vmatprep.subr.bf16.mxu0 0
    %66 = vmatpush1.bf16.msra.mxu0 %v50
    %67 = vmatprep.subr.bf16.mxu0 0
    %68 = vmatpush1.bf16.msra.mxu0 %v51
    %69 = vmatprep.subr.bf16.mxu0 0
    %70 = vmatpush1.bf16.msra.mxu0 0
    %71 = vmatprep.subr.bf16.mxu0 0
    %72 = vmatpush1.bf16.msra.mxu0 0
    %73 = vmatprep.subr.bf16.mxu0 0
    %74 = vmatpush1.bf16.msra.mxu0 0
    %75 = vmatprep.subr.bf16.mxu0 0
    %76 = vmatpush1.bf16.msra.mxu0 0
    %77 = vmatprep.subr.bf16.mxu0 0
    %78 = vmatpush1.bf16.msra.mxu0 0
    %79 = vmatprep.subr.bf16.mxu0 0
    %80 = vmatpush1.bf16.msra.mxu0 0
    %81 = vmatprep.subr.bf16.mxu0 0
    %82 = vmatpush1.bf16.msra.mxu0 0
    %83 = vmatprep.subr.bf16.mxu0 0
    %84 = vmatpush1.bf16.msra.mxu0 0
    %85 = vmatprep.subr.bf16.mxu0 0
    %86 = vmatpush1.bf16.msra.mxu0 0
    %87 = vmatprep.subr.bf16.mxu0 0
    %88 = vmatpush1.bf16.msra.mxu0 0
    %89 = vmatprep.subr.bf16.mxu0 0
    %90 = vmatpush1.bf16.msra.mxu0 0
    %91 = vmatprep.subr.bf16.mxu0 0
    %92 = vmatpush1.bf16.msra.mxu0 0
    %93 = vmatprep.subr.bf16.mxu0 0
    %94 = vmatpush1.bf16.msra.mxu0 0
    %95 = vmatprep.subr.bf16.mxu0 0
    %96 = vmatpush1.bf16.msra.mxu0 0
    %97 = vmatprep.mubr.bf16.mxu0 0
    %98 = vmatmul.mubr.bf16.gmra.mrb[0].mxu0 %v63
    %v99 = vpop.f32.mrb[0].mxu0
    %v100 = vadd.f32 0.0, %v99
    %v101 = vpop.f32.mrb[0].mxu0
    %v102 = vpop.f32.mrb[0].mxu0
    %v103 = vadd.f32 0.0, %v102
    %v104 = vpop.f32.mrb[0].mxu0
    %105 = vdwg.mxu0
    %v106 = vadd.f32 %v52, %v100
    %v107 = vadd.f32 %v53, %v103
    %vm108 = vcmask 523264
    %109 = vst.msk [vmem:[#allocation7] sm:$0xff] %vm108, %v106
    %110 = vst.msk [vmem:[#allocation7 + $0x8] sm:$0xff] %vm108, %v107
    // Predicated region
    $region26: #{tpu_custom_call.1} parent=1 // pred_check
      %p111 = pneg %p42
    $region27: #{tpu_custom_call.1} parent=1 // pred_check_branch
      %113 = sbr.rel (%p111) target = $region29
    $region28: #{tpu_custom_call.1} parent=1 // pred_region
      %v114 = vld [vmem:[#allocation7] sm:$0xff]
      %v115 = vld [vmem:[#allocation7 + $0x8] sm:$0xff]
      %v116 = vld [vmem:[%s2] sm:$0x1]
      %v118 = vlaneseq
      %v119 = vshrl.u32 %v118, 7
      %v120 = vsub.s32 0, %v119
      %v121 = vrot.slane %v116, %v120
      %v123 = vmul.f32 %v114, %v121
      %v124 = vmul.f32 %v115, %v121
      %125 = vst.msk [vmem:[#allocation7] sm:$0xff] %vm108, %v123
      %126 = vst.msk [vmem:[#allocation7 + $0x8] sm:$0xff] %vm108, %v124
    $region29: #{tpu_custom_call.1} parent=1 // pred_fallthru
      _
    // Predicated region
    $region30: #{tpu_custom_call.1} parent=1 // pred_check
      _
    $region31: #{tpu_custom_call.1} parent=1 // pred_check_branch
      %128 = sbr.rel (0) target = $region33
    $region32: #{tpu_custom_call.1} parent=1 // pred_region
      %s130 = ssub.s32 256, 256
      %131 = vsyncadd [#allocation4], %s130
      %s132 = sshll.u32 [#allocation7], 4
      %s133 = int_to_ptr.vmem [resolvable:$true] %s132
      %138 = dma.vmem_to_hbm [thread:$0]  %s133, 256, %s3, [#allocation4], 128, 128, 8
    $region33: #{tpu_custom_call.1} parent=1 // pred_fallthru
      _
    // Predicated region
    $region34: #{tpu_custom_call.1} parent=1 // pred_check
      _
    $region35: #{tpu_custom_call.1} parent=1 // pred_check_branch
      %140 = sbr.rel (0) target = $region37
    $region36: #{tpu_custom_call.1} parent=1 // pred_region
      %141 = dma.done [#allocation4], 256
    $region37: #{tpu_custom_call.1} parent=1 // pred_fallthru
      _
    %142 = vsyncpa [#allocation3], 1
    %143 = vsyncpa [#allocation6], 1
    %144 = vsyncpa [#allocation4], 1

</llo_original>
